<compile_context>
chip_gen: v7x
topology: tpu7x:2x2x1
jax: 0.10.0
libtpu: 0.0.40
codegen_flags: <defaults>
</compile_context>

<pallas_src>
import jax
import jax.numpy as jnp
from jax.experimental import pallas as pl
from jax.experimental.pallas import tpu as pltpu


def _vae_kernel(x_ref, eps_ref,
                w1_ref, b1_ref,
                w_enc_ref, b_enc_ref,
                w3_ref, b3_ref,
                w4_ref, b4_ref,
                recon_ref, mulv_ref):
    x = x_ref[...]

    # ---------------- encoder ----------------
    h1 = jnp.dot(x, w1_ref[...], preferred_element_type=jnp.float32) + b1_ref[...]
    h1 = jnp.maximum(h1, 0.0)                                        # ReLU

    # fused fc21 || fc22 head: one wider matmul, static split afterwards.
    enc = jnp.dot(h1, w_enc_ref[...], preferred_element_type=jnp.float32) + b_enc_ref[...]
    d_lat = enc.shape[-1] // 2
    mu = enc[:, :d_lat]
    logvar = enc[:, d_lat:]

    # ------------- reparameterize -------------
    std = jnp.exp(0.5 * logvar)
    z = mu + eps_ref[...] * std

    # ---------------- decoder ----------------
    h3 = jnp.dot(z, w3_ref[...], preferred_element_type=jnp.float32) + b3_ref[...]
    h3 = jnp.maximum(h3, 0.0)                                        # ReLU
    logits = jnp.dot(h3, w4_ref[...], preferred_element_type=jnp.float32) + b4_ref[...]
    # sigmoid: exp on EUP + reciprocal on EUP (vrcp), keeps the VALU free.
    recon = pl.reciprocal(1.0 + jnp.exp(-logits), approx=True)

    recon_ref[...] = recon.astype(recon_ref.dtype)
    # packed mu || logvar output -> lane-denser store than two narrow outputs.
    mulv_ref[...] = enc.astype(mulv_ref.dtype)


def vae_forward(x, eps, params, *, block_batch=None,
                vmem_limit_bytes=32 * 1024 * 1024):
    """Fused VAE forward. x: (B, D_in) f32, eps: (B, D_lat) f32.
    Returns (recon, mu, logvar)."""
    B, D_in = x.shape
    D_lat = eps.shape[1]
    H = params["w1"].shape[1]

    # Fused encoder head (fc21 || fc22): (H, 2*D_lat), (1, 2*D_lat).
    w_enc = jnp.concatenate([params["w21"], params["w22"]], axis=1)
    b_enc = jnp.concatenate([params["b21"], params["b22"]], axis=1)

    # ---- batch tile size (second-to-last block dim: multiple of 8 or == B) ----
    if block_batch is None:
        block_batch = B if B <= 256 else 256
    TB = min(block_batch, B)
    if TB != B:
        TB = max(8, (TB // 8) * 8)
    grid = (pl.cdiv(B, TB),)

    # Batch-tiled activations / outputs; weights & biases stay resident in VMEM.
    def tile_spec(d):
        return pl.BlockSpec((TB, d), lambda i: (i, 0))

    def resident_spec(arr):
        return pl.BlockSpec(arr.shape, lambda i: (0, 0))

    weights = [params["w1"], params["b1"], w_enc, b_enc,
               params["w3"], params["b3"], params["w4"], params["b4"]]

    in_specs = [tile_spec(D_in), tile_spec(D_lat)] + [resident_spec(w) for w in weights]
    out_specs = (tile_spec(D_in), tile_spec(2 * D_lat))

    out_shape = (
        jax.ShapeDtypeStruct((B, D_in), jnp.float32),        # recon
        jax.ShapeDtypeStruct((B, 2 * D_lat), jnp.float32),   # packed mu || logvar
    )

    # ---- advisory cost estimate for XLA scheduling ----
    flops = 2 * B * (D_in * H + H * 2 * D_lat + D_lat * H + H * D_in)
    transcendentals = B * (D_lat + 2 * D_in)                 # exp(std), exp(sig), vrcp
    bytes_accessed = 4 * (x.size + eps.size + sum(int(w.size) for w in weights)
                          + B * D_in + B * 2 * D_lat)

    recon, mulv = pl.pallas_call(
        _vae_kernel,
        out_shape=out_shape,
        grid_spec=pltpu.PrefetchScalarGridSpec(
            num_scalar_prefetch=0,
            grid=grid,
            in_specs=in_specs,
            out_specs=out_specs,
        ),
        compiler_params=pltpu.CompilerParams(
            dimension_semantics=("parallel",),               # shard batch across TCs on v7x
            vmem_limit_bytes=vmem_limit_bytes,
        ),
        cost_estimate=pl.CostEstimate(
            flops=flops,
            transcendentals=transcendentals,
            bytes_accessed=bytes_accessed,
        ),
    )(x, eps, *weights)

    mu = mulv[:, :D_lat]
    logvar = mulv[:, D_lat:]
    return recon, mu, logvar


def init_params(key, input_ndim, output_ndim, hidden=64):
    """nn.Linear default init: U(-1/sqrt(fan_in), 1/sqrt(fan_in)).
    Weights stored as (in_features, out_features); biases as (1, out_features)."""
    def linear(k, fan_in, fan_out):
        kw, kb = jax.random.split(k)
        bound = 1.0 / jnp.sqrt(fan_in)
        w = jax.random.uniform(kw, (fan_in, fan_out), jnp.float32, -bound, bound)
        b = jax.random.uniform(kb, (1, fan_out), jnp.float32, -bound, bound)
        return w, b

    k1, k21, k22, k3, k4 = jax.random.split(key, 5)
    w1, b1 = linear(k1, input_ndim, hidden)
    w21, b21 = linear(k21, hidden, output_ndim)
    w22, b22 = linear(k22, hidden, output_ndim)
    w3, b3 = linear(k3, output_ndim, hidden)
    w4, b4 = linear(k4, hidden, input_ndim)
    return dict(w1=w1, b1=b1, w21=w21, b21=b21, w22=w22, b22=b22,
                w3=w3, b3=b3, w4=w4, b4=b4)


def vae_reference(x, eps, p):
    """Pure-JAX reference of the same forward pass (mirrors the PyTorch module)."""
    h1 = jnp.maximum(x @ p["w1"] + p["b1"], 0.0)
    mu = h1 @ p["w21"] + p["b21"]
    logvar = h1 @ p["w22"] + p["b22"]
    z = mu + eps * jnp.exp(0.5 * logvar)
    h3 = jnp.maximum(z @ p["w3"] + p["b3"], 0.0)
    recon = jax.nn.sigmoid(h3 @ p["w4"] + p["b4"])
    return recon, mu, logvar


if __name__ == "__main__":
    input_ndim = 32
    output_ndim = 16
    batch = 64          # small, but enough to exercise a 2-step batch grid
    block_batch = 32    # -> grid = (2,): pipelined, weights stay resident

    key = jax.random.PRNGKey(0)
    k_params, k_x, k_eps = jax.random.split(key, 3)

    params = init_params(k_params, input_ndim, output_ndim)
    x = jax.random.normal(k_x, (batch, input_ndim), jnp.float32)
    eps = jax.random.normal(k_eps, (batch, output_ndim), jnp.float32)  # torch.randn_like(std)

    recon, mu, logvar = jax.block_until_ready(
        vae_forward(x, eps, params, block_batch=block_batch))

    # sanity check against pure-JAX reference
    r_ref, mu_ref, lv_ref = vae_reference(x, eps, params)
    assert jnp.allclose(mu, mu_ref, atol=1e-4, rtol=1e-4)
    assert jnp.allclose(logvar, lv_ref, atol=1e-4, rtol=1e-4)
    # recon uses the EUP approximate reciprocal -> slightly looser tolerance
    assert jnp.allclose(recon, r_ref, atol=2e-3, rtol=2e-3)

    print("KERNEL_OK")
</pallas_src>

<mosaic_0001>
module attributes {stable_mosaic.version = 11 : i64} {
  func.func @_vae_kernel(%arg0: i32, %arg1: memref<32x32xf32, #tpu.memory_space<vmem>>, %arg2: memref<32x16xf32, #tpu.memory_space<vmem>>, %arg3: memref<32x64xf32, #tpu.memory_space<vmem>>, %arg4: memref<1x64xf32, #tpu.memory_space<vmem>>, %arg5: memref<64x32xf32, #tpu.memory_space<vmem>>, %arg6: memref<1x32xf32, #tpu.memory_space<vmem>>, %arg7: memref<16x64xf32, #tpu.memory_space<vmem>>, %arg8: memref<1x64xf32, #tpu.memory_space<vmem>>, %arg9: memref<64x32xf32, #tpu.memory_space<vmem>>, %arg10: memref<1x32xf32, #tpu.memory_space<vmem>>, %arg11: memref<32x32xf32, #tpu.memory_space<vmem>>, %arg12: memref<32x32xf32, #tpu.memory_space<vmem>>) attributes {dimension_semantics = [#tpu.dimension_semantics<parallel>], iteration_bounds = array<i64: 2>, scalar_prefetch = 0 : i64, scratch_operands = 0 : i64, tpu.core_type = #tpu.core_type<tc>, window_params = [{transform_indices = @transform_0, window_bounds = array<i64: 32, 32>}, {transform_indices = @transform_1, window_bounds = array<i64: 32, 16>}, {pipeline_mode = #tpu.pipeline_mode<synchronous>, transform_indices = @transform_2, window_bounds = array<i64: 32, 64>}, {pipeline_mode = #tpu.pipeline_mode<synchronous>, transform_indices = @transform_3, window_bounds = array<i64: 1, 64>}, {pipeline_mode = #tpu.pipeline_mode<synchronous>, transform_indices = @transform_4, window_bounds = array<i64: 64, 32>}, {pipeline_mode = #tpu.pipeline_mode<synchronous>, transform_indices = @transform_5, window_bounds = array<i64: 1, 32>}, {pipeline_mode = #tpu.pipeline_mode<synchronous>, transform_indices = @transform_6, window_bounds = array<i64: 16, 64>}, {pipeline_mode = #tpu.pipeline_mode<synchronous>, transform_indices = @transform_7, window_bounds = array<i64: 1, 64>}, {pipeline_mode = #tpu.pipeline_mode<synchronous>, transform_indices = @transform_8, window_bounds = array<i64: 64, 32>}, {pipeline_mode = #tpu.pipeline_mode<synchronous>, transform_indices = @transform_9, window_bounds = array<i64: 1, 32>}, {transform_indices = @transform_10, window_bounds = array<i64: 32, 32>}, {transform_indices = @transform_11, window_bounds = array<i64: 32, 32>}]} {
    %c0 = arith.constant 0 : index
    %c0_0 = arith.constant 0 : index
    %0 = vector.load %arg1[%c0, %c0_0] : memref<32x32xf32, #tpu.memory_space<vmem>>, vector<32x32xf32>
    %c0_1 = arith.constant 0 : index
    %c0_2 = arith.constant 0 : index
    %1 = vector.load %arg3[%c0_1, %c0_2] : memref<32x64xf32, #tpu.memory_space<vmem>>, vector<32x64xf32>
    %cst = arith.constant dense<0.000000e+00> : vector<32x64xf32>
    %2 = tpu.matmul %0, %1, %cst {dimension_numbers = #tpu.dot_dimension_numbers<[1], [0], [0], [1], [0, 0, 1, 1], [], []>} : vector<32x32xf32>, vector<32x64xf32>, vector<32x64xf32> -> vector<32x64xf32>
    %c0_3 = arith.constant 0 : index
    %c0_4 = arith.constant 0 : index
    %3 = vector.load %arg4[%c0_3, %c0_4] : memref<1x64xf32, #tpu.memory_space<vmem>>, vector<1x64xf32>
    %4 = vector.broadcast %3 : vector<1x64xf32> to vector<32x64xf32>
    %5 = arith.addf %2, %4 : vector<32x64xf32>
    %cst_5 = arith.constant 0.000000e+00 : f32
    %6 = vector.broadcast %cst_5 : f32 to vector<32x64xf32>
    %7 = arith.maximumf %5, %6 : vector<32x64xf32>
    %c0_6 = arith.constant 0 : index
    %c0_7 = arith.constant 0 : index
    %8 = vector.load %arg5[%c0_6, %c0_7] : memref<64x32xf32, #tpu.memory_space<vmem>>, vector<64x32xf32>
    %cst_8 = arith.constant dense<0.000000e+00> : vector<32x32xf32>
    %9 = tpu.matmul %7, %8, %cst_8 {dimension_numbers = #tpu.dot_dimension_numbers<[1], [0], [0], [1], [0, 0, 1, 1], [], []>} : vector<32x64xf32>, vector<64x32xf32>, vector<32x32xf32> -> vector<32x32xf32>
    %c0_9 = arith.constant 0 : index
    %c0_10 = arith.constant 0 : index
    %10 = vector.load %arg6[%c0_9, %c0_10] : memref<1x32xf32, #tpu.memory_space<vmem>>, vector<1x32xf32>
    %11 = vector.broadcast %10 : vector<1x32xf32> to vector<32x32xf32>
    %12 = arith.addf %9, %11 : vector<32x32xf32>
    %13 = vector.extract_strided_slice %12 {offsets = [0, 0], sizes = [32, 16], strides = [1, 1]} : vector<32x32xf32> to vector<32x16xf32>
    %14 = vector.extract_strided_slice %12 {offsets = [0, 16], sizes = [32, 16], strides = [1, 1]} : vector<32x32xf32> to vector<32x16xf32>
    %cst_11 = arith.constant 5.000000e-01 : f32
    %15 = vector.broadcast %cst_11 : f32 to vector<32x16xf32>
    %16 = arith.mulf %15, %14 : vector<32x16xf32>
    %17 = math.exp %16 : vector<32x16xf32>
    %c0_12 = arith.constant 0 : index
    %c0_13 = arith.constant 0 : index
    %18 = vector.load %arg2[%c0_12, %c0_13] : memref<32x16xf32, #tpu.memory_space<vmem>>, vector<32x16xf32>
    %19 = arith.mulf %18, %17 : vector<32x16xf32>
    %20 = arith.addf %13, %19 : vector<32x16xf32>
    %c0_14 = arith.constant 0 : index
    %c0_15 = arith.constant 0 : index
    %21 = vector.load %arg7[%c0_14, %c0_15] : memref<16x64xf32, #tpu.memory_space<vmem>>, vector<16x64xf32>
    %cst_16 = arith.constant dense<0.000000e+00> : vector<32x64xf32>
    %22 = tpu.matmul %20, %21, %cst_16 {dimension_numbers = #tpu.dot_dimension_numbers<[1], [0], [0], [1], [0, 0, 1, 1], [], []>} : vector<32x16xf32>, vector<16x64xf32>, vector<32x64xf32> -> vector<32x64xf32>
    %c0_17 = arith.constant 0 : index
    %c0_18 = arith.constant 0 : index
    %23 = vector.load %arg8[%c0_17, %c0_18] : memref<1x64xf32, #tpu.memory_space<vmem>>, vector<1x64xf32>
    %24 = vector.broadcast %23 : vector<1x64xf32> to vector<32x64xf32>
    %25 = arith.addf %22, %24 : vector<32x64xf32>
    %cst_19 = arith.constant 0.000000e+00 : f32
    %26 = vector.broadcast %cst_19 : f32 to vector<32x64xf32>
    %27 = arith.maximumf %25, %26 : vector<32x64xf32>
    %c0_20 = arith.constant 0 : index
    %c0_21 = arith.constant 0 : index
    %28 = vector.load %arg9[%c0_20, %c0_21] : memref<64x32xf32, #tpu.memory_space<vmem>>, vector<64x32xf32>
    %cst_22 = arith.constant dense<0.000000e+00> : vector<32x32xf32>
    %29 = tpu.matmul %27, %28, %cst_22 {dimension_numbers = #tpu.dot_dimension_numbers<[1], [0], [0], [1], [0, 0, 1, 1], [], []>} : vector<32x64xf32>, vector<64x32xf32>, vector<32x32xf32> -> vector<32x32xf32>
    %c0_23 = arith.constant 0 : index
    %c0_24 = arith.constant 0 : index
    %30 = vector.load %arg10[%c0_23, %c0_24] : memref<1x32xf32, #tpu.memory_space<vmem>>, vector<1x32xf32>
    %31 = vector.broadcast %30 : vector<1x32xf32> to vector<32x32xf32>
    %32 = arith.addf %29, %31 : vector<32x32xf32>
    %cst_25 = arith.constant 0.000000e+00 : f32
    %33 = vector.broadcast %cst_25 : f32 to vector<32x32xf32>
    %34 = arith.subf %33, %32 : vector<32x32xf32>
    %35 = math.exp %34 : vector<32x32xf32>
    %cst_26 = arith.constant 1.000000e+00 : f32
    %36 = vector.broadcast %cst_26 : f32 to vector<32x32xf32>
    %37 = arith.addf %36, %35 : vector<32x32xf32>
    %38 = tpu.reciprocal %37 {approx = true} : vector<32x32xf32> -> vector<32x32xf32>
    %c0_27 = arith.constant 0 : index
    %c0_28 = arith.constant 0 : index
    %39 = vector.load %arg11[%c0_27, %c0_28] : memref<32x32xf32, #tpu.memory_space<vmem>>, vector<32x32xf32>
    tpu.vector_store %arg11[%c0_27, %c0_28], %38 {strides = array<i32>} : memref<32x32xf32, #tpu.memory_space<vmem>>, vector<32x32xf32>,
    %c0_29 = arith.constant 0 : index
    %c0_30 = arith.constant 0 : index
    %40 = vector.load %arg12[%c0_29, %c0_30] : memref<32x32xf32, #tpu.memory_space<vmem>>, vector<32x32xf32>
    tpu.vector_store %arg12[%c0_29, %c0_30], %12 {strides = array<i32>} : memref<32x32xf32, #tpu.memory_space<vmem>>, vector<32x32xf32>,
    return
  }
  func.func @transform_0(%arg0: i32) -> (i32, i32) {
    %c0_i32 = arith.constant 0 : i32
    %c0_i32_0 = arith.constant 0 : i32
    return %arg0, %c0_i32 : i32, i32
  }
  func.func @transform_1(%arg0: i32) -> (i32, i32) {
    %c0_i32 = arith.constant 0 : i32
    %c0_i32_0 = arith.constant 0 : i32
    return %arg0, %c0_i32 : i32, i32
  }
  func.func @transform_2(%arg0: i32) -> (i32, i32) {
    %c0_i32 = arith.constant 0 : i32
    %c0_i32_0 = arith.constant 0 : i32
    %c0_i32_1 = arith.constant 0 : i32
    return %c0_i32, %c0_i32_0 : i32, i32
  }
  func.func @transform_3(%arg0: i32) -> (i32, i32) {
    %c0_i32 = arith.constant 0 : i32
    %c0_i32_0 = arith.constant 0 : i32
    %c0_i32_1 = arith.constant 0 : i32
    return %c0_i32, %c0_i32_0 : i32, i32
  }
  func.func @transform_4(%arg0: i32) -> (i32, i32) {
    %c0_i32 = arith.constant 0 : i32
    %c0_i32_0 = arith.constant 0 : i32
    %c0_i32_1 = arith.constant 0 : i32
    return %c0_i32, %c0_i32_0 : i32, i32
  }
  func.func @transform_5(%arg0: i32) -> (i32, i32) {
    %c0_i32 = arith.constant 0 : i32
    %c0_i32_0 = arith.constant 0 : i32
    %c0_i32_1 = arith.constant 0 : i32
    return %c0_i32, %c0_i32_0 : i32, i32
  }
  func.func @transform_6(%arg0: i32) -> (i32, i32) {
    %c0_i32 = arith.constant 0 : i32
    %c0_i32_0 = arith.constant 0 : i32
    %c0_i32_1 = arith.constant 0 : i32
    return %c0_i32, %c0_i32_0 : i32, i32
  }
  func.func @transform_7(%arg0: i32) -> (i32, i32) {
    %c0_i32 = arith.constant 0 : i32
    %c0_i32_0 = arith.constant 0 : i32
    %c0_i32_1 = arith.constant 0 : i32
    return %c0_i32, %c0_i32_0 : i32, i32
  }
  func.func @transform_8(%arg0: i32) -> (i32, i32) {
    %c0_i32 = arith.constant 0 : i32
    %c0_i32_0 = arith.constant 0 : i32
    %c0_i32_1 = arith.constant 0 : i32
    return %c0_i32, %c0_i32_0 : i32, i32
  }
  func.func @transform_9(%arg0: i32) -> (i32, i32) {
    %c0_i32 = arith.constant 0 : i32
    %c0_i32_0 = arith.constant 0 : i32
    %c0_i32_1 = arith.constant 0 : i32
    return %c0_i32, %c0_i32_0 : i32, i32
  }
  func.func @transform_10(%arg0: i32) -> (i32, i32) {
    %c0_i32 = arith.constant 0 : i32
    %c0_i32_0 = arith.constant 0 : i32
    return %arg0, %c0_i32 : i32, i32
  }
  func.func @transform_11(%arg0: i32) -> (i32, i32) {
    %c0_i32 = arith.constant 0 : i32
    %c0_i32_0 = arith.constant 0 : i32
    return %arg0, %c0_i32 : i32, i32
  }
}

</mosaic_0001>

<llo_original>
// kernel: tpu_custom_call.1
$region0: #{tpu_custom_call.1}
  #allocation0 [shape = 'u32[]', space=smem, size = 0x4, offset = 0x4, fixed_abs, tag = 'smem constant byte address 0x4 - core index']
  #allocation1 [shape = 'u32[144,128]{1,0:T(1,128)}', space=vmem, size = 0x12000, scoped, tag = 'internal scratch']
  %s0 = inlined_call_operand.vmem [shape: f32[64,32], index: 0, kind: input, shape index: {}]
  %s1 = inlined_call_operand.vmem [shape: f32[64,16], index: 1, kind: input, shape index: {}]
  %s2 = inlined_call_operand.vmem [shape: f32[32,64], index: 2, kind: input, shape index: {}]
  %s3 = inlined_call_operand.vmem [shape: f32[1,64], index: 3, kind: input, shape index: {}]
  %s4 = inlined_call_operand.vmem [shape: f32[64,32], index: 4, kind: input, shape index: {}]
  %s5 = inlined_call_operand.vmem [shape: f32[1,32], index: 5, kind: input, shape index: {}]
  %s6 = inlined_call_operand.vmem [shape: f32[16,64], index: 6, kind: input, shape index: {}]
  %s7 = inlined_call_operand.vmem [shape: f32[1,64], index: 7, kind: input, shape index: {}]
  %s8 = inlined_call_operand.vmem [shape: f32[64,32], index: 8, kind: input, shape index: {}]
  %s9 = inlined_call_operand.vmem [shape: f32[1,32], index: 9, kind: input, shape index: {}]
  %s10 = inlined_call_operand.vmem [shape: f32[64,32], index: 10, kind: output, shape index: {0}]
  %s11 = inlined_call_operand.vmem [shape: f32[64,32], index: 11, kind: output, shape index: {1}]
  %12 = xla_tuple %s10, %s11
  %s13 = sld [smem:[#allocation0]]
  $region81: #{tpu_custom_call.1} parent=0
    _
  %s15 = ssub.s32 1, %s13
  %s16 = scalar_select 0, %s15, %s13
  loop: start=0, step=1, limit=4
  $region2: #{tpu_custom_call.1} parent=0 // loop_pre_header
    _
  $region3: #{tpu_custom_call.1} parent=0 // loop_header
    %s18 = sphi 0, %s22
    %p19 = scmp.ge.s32.totalorder %s18, 4
    %s28 = sphi 0, %s30
    %s31 = sphi 0, %s28
    %s32 = sphi 0, %s31
    %s48 = sphi 0, %s32
    %s54 = sphi 0, %s56
    %s57 = sphi 0, %s54
    %s58 = sphi 0, %s57
    %s74 = sphi 0, %s58
    %s78 = sphi 0, %s78
    %s80 = sphi 0, %s78
    %s81 = sphi 0, %s80
    %s95 = sphi 0, %s81
    %s99 = sphi 0, %s99
    %s101 = sphi 0, %s99
    %s102 = sphi 0, %s101
    %s116 = sphi 0, %s102
    %s120 = sphi 0, %s120
    %s122 = sphi 0, %s120
    %s123 = sphi 0, %s122
    %s137 = sphi 0, %s123
    %s141 = sphi 0, %s141
    %s143 = sphi 0, %s141
    %s144 = sphi 0, %s143
    %s158 = sphi 0, %s144
    %s162 = sphi 0, %s162
    %s164 = sphi 0, %s162
    %s165 = sphi 0, %s164
    %s179 = sphi 0, %s165
    %s183 = sphi 0, %s183
    %s185 = sphi 0, %s183
    %s186 = sphi 0, %s185
    %s200 = sphi 0, %s186
    %s204 = sphi 0, %s204
    %s206 = sphi 0, %s204
    %s207 = sphi 0, %s206
    %s221 = sphi 0, %s207
    %s225 = sphi 0, %s225
    %s227 = sphi 0, %s225
    %s228 = sphi 0, %s227
    %s242 = sphi 0, %s228
    %s248 = sphi 0, %s250
    %s251 = sphi 0, %s248
    %s252 = sphi 0, %s251
    %s268 = sphi 0, %s252
    %s274 = sphi 0, %s276
    %s277 = sphi 0, %s274
    %s278 = sphi 0, %s277
    %s294 = sphi 0, %s278
  $region4: #{tpu_custom_call.1} parent=0 // loop_header_branch
    %21 = sbr.rel (%p19) target = $region8
  $region5: #{tpu_custom_call.1} parent=0 // loop_body
    %s23 = ssub.s32 %s18, 1
    %s24 = ssub.s32 %s18, 2
    %s25 = sadd.s32 %s18, 1
    %s26 = ssub.s32 %s18, %s25
    %p27 = scmp.eq.s32.totalorder %s26, 0
    %s29 = sadd.s32 %s28, 1
    %s30 = scalar_select %p27, %s28, %s29
    %p33 = pneg %p27
    %p34 = scmp.eq.s32.totalorder %s18, 1
    %p35 = por %p33, %p34
    %p36 = scmp.ne.s32.totalorder %s28, %s31
    %p37 = scmp.eq.s32.totalorder %s18, 0
    %p38 = por %p36, %p37
    %p39 = scmp.ne.s32.totalorder %s28, %s31
    %p40 = scmp.eq.s32.totalorder %s23, 1
    %p41 = por %p39, %p40
    %p42 = scmp.ne.s32.totalorder %s31, %s32
    %p43 = scmp.eq.s32.totalorder %s23, 0
    %p44 = por %p42, %p43
    %p45 = scmp.ne.s32.totalorder %s31, %s32
    %p46 = scmp.eq.s32.totalorder %s24, 1
    %p47 = por %p45, %p46
    %p49 = scmp.ne.s32.totalorder %s32, %s48
    %p50 = scmp.eq.s32.totalorder %s24, 0
    %p51 = por %p49, %p50
    %s52 = ssub.s32 %s18, %s25
    %p53 = scmp.eq.s32.totalorder %s52, 0
    %s55 = sadd.s32 %s54, 1
    %s56 = scalar_select %p53, %s54, %s55
    %p59 = pneg %p53
    %p60 = scmp.eq.s32.totalorder %s18, 1
    %p61 = por %p59, %p60
    %p62 = scmp.ne.s32.totalorder %s54, %s57
    %p63 = scmp.eq.s32.totalorder %s18, 0
    %p64 = por %p62, %p63
    %p65 = scmp.ne.s32.totalorder %s54, %s57
    %p66 = scmp.eq.s32.totalorder %s23, 1
    %p67 = por %p65, %p66
    %p68 = scmp.ne.s32.totalorder %s57, %s58
    %p69 = scmp.eq.s32.totalorder %s23, 0
    %p70 = por %p68, %p69
    %p71 = scmp.ne.s32.totalorder %s57, %s58
    %p72 = scmp.eq.s32.totalorder %s24, 1
    %p73 = por %p71, %p72
    %p75 = scmp.ne.s32.totalorder %s58, %s74
    %p76 = scmp.eq.s32.totalorder %s24, 0
    %p77 = por %p75, %p76
    %s79 = sadd.s32 %s78, 1
    %p82 = scmp.eq.s32.totalorder %s18, 1
    %p83 = scmp.ne.s32.totalorder %s78, %s80
    %p84 = scmp.eq.s32.totalorder %s18, 0
    %p85 = por %p83, %p84
    %p86 = scmp.ne.s32.totalorder %s78, %s80
    %p87 = scmp.eq.s32.totalorder %s23, 1
    %p88 = por %p86, %p87
    %p89 = scmp.ne.s32.totalorder %s80, %s81
    %p90 = scmp.eq.s32.totalorder %s23, 0
    %p91 = por %p89, %p90
    %p92 = scmp.ne.s32.totalorder %s80, %s81
    %p93 = scmp.eq.s32.totalorder %s24, 1
    %p94 = por %p92, %p93
    %p96 = scmp.ne.s32.totalorder %s81, %s95
    %p97 = scmp.eq.s32.totalorder %s24, 0
    %p98 = por %p96, %p97
    %s100 = sadd.s32 %s99, 1
    %p103 = scmp.eq.s32.totalorder %s18, 1
    %p104 = scmp.ne.s32.totalorder %s99, %s101
    %p105 = scmp.eq.s32.totalorder %s18, 0
    %p106 = por %p104, %p105
    %p107 = scmp.ne.s32.totalorder %s99, %s101
    %p108 = scmp.eq.s32.totalorder %s23, 1
    %p109 = por %p107, %p108
    %p110 = scmp.ne.s32.totalorder %s101, %s102
    %p111 = scmp.eq.s32.totalorder %s23, 0
    %p112 = por %p110, %p111
    %p113 = scmp.ne.s32.totalorder %s101, %s102
    %p114 = scmp.eq.s32.totalorder %s24, 1
    %p115 = por %p113, %p114
    %p117 = scmp.ne.s32.totalorder %s102, %s116
    %p118 = scmp.eq.s32.totalorder %s24, 0
    %p119 = por %p117, %p118
    %s121 = sadd.s32 %s120, 1
    %p124 = scmp.eq.s32.totalorder %s18, 1
    %p125 = scmp.ne.s32.totalorder %s120, %s122
    %p126 = scmp.eq.s32.totalorder %s18, 0
    %p127 = por %p125, %p126
    %p128 = scmp.ne.s32.totalorder %s120, %s122
    %p129 = scmp.eq.s32.totalorder %s23, 1
    %p130 = por %p128, %p129
    %p131 = scmp.ne.s32.totalorder %s122, %s123
    %p132 = scmp.eq.s32.totalorder %s23, 0
    %p133 = por %p131, %p132
    %p134 = scmp.ne.s32.totalorder %s122, %s123
    %p135 = scmp.eq.s32.totalorder %s24, 1
    %p136 = por %p134, %p135
    %p138 = scmp.ne.s32.totalorder %s123, %s137
    %p139 = scmp.eq.s32.totalorder %s24, 0
    %p140 = por %p138, %p139
    %s142 = sadd.s32 %s141, 1
    %p145 = scmp.eq.s32.totalorder %s18, 1
    %p146 = scmp.ne.s32.totalorder %s141, %s143
    %p147 = scmp.eq.s32.totalorder %s18, 0
    %p148 = por %p146, %p147
    %p149 = scmp.ne.s32.totalorder %s141, %s143
    %p150 = scmp.eq.s32.totalorder %s23, 1
    %p151 = por %p149, %p150
    %p152 = scmp.ne.s32.totalorder %s143, %s144
    %p153 = scmp.eq.s32.totalorder %s23, 0
    %p154 = por %p152, %p153
    %p155 = scmp.ne.s32.totalorder %s143, %s144
    %p156 = scmp.eq.s32.totalorder %s24, 1
    %p157 = por %p155, %p156
    %p159 = scmp.ne.s32.totalorder %s144, %s158
    %p160 = scmp.eq.s32.totalorder %s24, 0
    %p161 = por %p159, %p160
    %s163 = sadd.s32 %s162, 1
    %p166 = scmp.eq.s32.totalorder %s18, 1
    %p167 = scmp.ne.s32.totalorder %s162, %s164
    %p168 = scmp.eq.s32.totalorder %s18, 0
    %p169 = por %p167, %p168
    %p170 = scmp.ne.s32.totalorder %s162, %s164
    %p171 = scmp.eq.s32.totalorder %s23, 1
    %p172 = por %p170, %p171
    %p173 = scmp.ne.s32.totalorder %s164, %s165
    %p174 = scmp.eq.s32.totalorder %s23, 0
    %p175 = por %p173, %p174
    %p176 = scmp.ne.s32.totalorder %s164, %s165
    %p177 = scmp.eq.s32.totalorder %s24, 1
    %p178 = por %p176, %p177
    %p180 = scmp.ne.s32.totalorder %s165, %s179
    %p181 = scmp.eq.s32.totalorder %s24, 0
    %p182 = por %p180, %p181
    %s184 = sadd.s32 %s183, 1
    %p187 = scmp.eq.s32.totalorder %s18, 1
    %p188 = scmp.ne.s32.totalorder %s183, %s185
    %p189 = scmp.eq.s32.totalorder %s18, 0
    %p190 = por %p188, %p189
    %p191 = scmp.ne.s32.totalorder %s183, %s185
    %p192 = scmp.eq.s32.totalorder %s23, 1
    %p193 = por %p191, %p192
    %p194 = scmp.ne.s32.totalorder %s185, %s186
    %p195 = scmp.eq.s32.totalorder %s23, 0
    %p196 = por %p194, %p195
    %p197 = scmp.ne.s32.totalorder %s185, %s186
    %p198 = scmp.eq.s32.totalorder %s24, 1
    %p199 = por %p197, %p198
    %p201 = scmp.ne.s32.totalorder %s186, %s200
    %p202 = scmp.eq.s32.totalorder %s24, 0
    %p203 = por %p201, %p202
    %s205 = sadd.s32 %s204, 1
    %p208 = scmp.eq.s32.totalorder %s18, 1
    %p209 = scmp.ne.s32.totalorder %s204, %s206
    %p210 = scmp.eq.s32.totalorder %s18, 0
    %p211 = por %p209, %p210
    %p212 = scmp.ne.s32.totalorder %s204, %s206
    %p213 = scmp.eq.s32.totalorder %s23, 1
    %p214 = por %p212, %p213
    %p215 = scmp.ne.s32.totalorder %s206, %s207
    %p216 = scmp.eq.s32.totalorder %s23, 0
    %p217 = por %p215, %p216
    %p218 = scmp.ne.s32.totalorder %s206, %s207
    %p219 = scmp.eq.s32.totalorder %s24, 1
    %p220 = por %p218, %p219
    %p222 = scmp.ne.s32.totalorder %s207, %s221
    %p223 = scmp.eq.s32.totalorder %s24, 0
    %p224 = por %p222, %p223
    %s226 = sadd.s32 %s225, 1
    %p229 = scmp.eq.s32.totalorder %s18, 1
    %p230 = scmp.ne.s32.totalorder %s225, %s227
    %p231 = scmp.eq.s32.totalorder %s18, 0
    %p232 = por %p230, %p231
    %p233 = scmp.ne.s32.totalorder %s225, %s227
    %p234 = scmp.eq.s32.totalorder %s23, 1
    %p235 = por %p233, %p234
    %p236 = scmp.ne.s32.totalorder %s227, %s228
    %p237 = scmp.eq.s32.totalorder %s23, 0
    %p238 = por %p236, %p237
    %p239 = scmp.ne.s32.totalorder %s227, %s228
    %p240 = scmp.eq.s32.totalorder %s24, 1
    %p241 = por %p239, %p240
    %p243 = scmp.ne.s32.totalorder %s228, %s242
    %p244 = scmp.eq.s32.totalorder %s24, 0
    %p245 = por %p243, %p244
    %s246 = ssub.s32 %s18, %s25
    %p247 = scmp.eq.s32.totalorder %s246, 0
    %s249 = sadd.s32 %s248, 1
    %s250 = scalar_select %p247, %s248, %s249
    %p253 = pneg %p247
    %p254 = scmp.eq.s32.totalorder %s18, 1
    %p255 = por %p253, %p254
    %p256 = scmp.ne.s32.totalorder %s248, %s251
    %p257 = scmp.eq.s32.totalorder %s18, 0
    %p258 = por %p256, %p257
    %p259 = scmp.ne.s32.totalorder %s248, %s251
    %p260 = scmp.eq.s32.totalorder %s23, 1
    %p261 = por %p259, %p260
    %p262 = scmp.ne.s32.totalorder %s251, %s252
    %p263 = scmp.eq.s32.totalorder %s23, 0
    %p264 = por %p262, %p263
    %p265 = scmp.ne.s32.totalorder %s251, %s252
    %p266 = scmp.eq.s32.totalorder %s24, 1
    %p267 = por %p265, %p266
    %p269 = scmp.ne.s32.totalorder %s252, %s268
    %p270 = scmp.eq.s32.totalorder %s24, 0
    %p271 = por %p269, %p270
    %s272 = ssub.s32 %s18, %s25
    %p273 = scmp.eq.s32.totalorder %s272, 0
    %s275 = sadd.s32 %s274, 1
    %s276 = scalar_select %p273, %s274, %s275
    %p279 = pneg %p273
    %p280 = scmp.eq.s32.totalorder %s18, 1
    %p281 = por %p279, %p280
    %p282 = scmp.ne.s32.totalorder %s274, %s277
    %p283 = scmp.eq.s32.totalorder %s18, 0
    %p284 = por %p282, %p283
    %p285 = scmp.ne.s32.totalorder %s274, %s277
    %p286 = scmp.eq.s32.totalorder %s23, 1
    %p287 = por %p285, %p286
    %p288 = scmp.ne.s32.totalorder %s277, %s278
    %p289 = scmp.eq.s32.totalorder %s23, 0
    %p290 = por %p288, %p289
    %p291 = scmp.ne.s32.totalorder %s277, %s278
    %p292 = scmp.eq.s32.totalorder %s24, 1
    %p293 = por %p291, %p292
    %p295 = scmp.ne.s32.totalorder %s278, %s294
    %p296 = scmp.eq.s32.totalorder %s24, 0
    %p297 = por %p295, %p296
    %p298 = scmp.le.s32.totalorder 1, %s18
    %p299 = scmp.lt.s32.totalorder %s18, 3
    %p300 = pnand %p298, %p299
    %p301 = pneg %p300
    // Predicated region
    $region9: #{tpu_custom_call.1} parent=5 // pred_check
      _
    $region10: #{tpu_custom_call.1} parent=5 // pred_check_branch
      %303 = sbr.rel (%p300) target = $region12
    $region11: #{tpu_custom_call.1} parent=5 // pred_region
      %s304 = ssub.s32 %s18, 1
      // Predicated region
      $region13: #{tpu_custom_call.1} parent=11 // pred_check
        %p305 = pneg %p91
      $region14: #{tpu_custom_call.1} parent=11 // pred_check_branch
        %307 = sbr.rel (%p305) target = $region16
      $region15: #{tpu_custom_call.1} parent=11 // pred_region
        _
      $region16: #{tpu_custom_call.1} parent=11 // pred_fallthru
        _
      // Predicated region
      $region17: #{tpu_custom_call.1} parent=11 // pred_check
        %p308 = pneg %p112
      $region18: #{tpu_custom_call.1} parent=11 // pred_check_branch
        %310 = sbr.rel (%p308) target = $region20
      $region19: #{tpu_custom_call.1} parent=11 // pred_region
        _
      $region20: #{tpu_custom_call.1} parent=11 // pred_fallthru
        _
      // Predicated region
      $region21: #{tpu_custom_call.1} parent=11 // pred_check
        %p311 = pneg %p133
      $region22: #{tpu_custom_call.1} parent=11 // pred_check_branch
        %313 = sbr.rel (%p311) target = $region24
      $region23: #{tpu_custom_call.1} parent=11 // pred_region
        _
      $region24: #{tpu_custom_call.1} parent=11 // pred_fallthru
        _
      // Predicated region
      $region25: #{tpu_custom_call.1} parent=11 // pred_check
        %p314 = pneg %p154
      $region26: #{tpu_custom_call.1} parent=11 // pred_check_branch
        %316 = sbr.rel (%p314) target = $region28
      $region27: #{tpu_custom_call.1} parent=11 // pred_region
        _
      $region28: #{tpu_custom_call.1} parent=11 // pred_fallthru
        _
      // Predicated region
      $region29: #{tpu_custom_call.1} parent=11 // pred_check
        %p317 = pneg %p175
      $region30: #{tpu_custom_call.1} parent=11 // pred_check_branch
        %319 = sbr.rel (%p317) target = $region32
      $region31: #{tpu_custom_call.1} parent=11 // pred_region
        _
      $region32: #{tpu_custom_call.1} parent=11 // pred_fallthru
        _
      // Predicated region
      $region33: #{tpu_custom_call.1} parent=11 // pred_check
        %p320 = pneg %p196
      $region34: #{tpu_custom_call.1} parent=11 // pred_check_branch
        %322 = sbr.rel (%p320) target = $region36
      $region35: #{tpu_custom_call.1} parent=11 // pred_region
        _
      $region36: #{tpu_custom_call.1} parent=11 // pred_fallthru
        _
      // Predicated region
      $region37: #{tpu_custom_call.1} parent=11 // pred_check
        %p323 = pneg %p217
      $region38: #{tpu_custom_call.1} parent=11 // pred_check_branch
        %325 = sbr.rel (%p323) target = $region40
      $region39: #{tpu_custom_call.1} parent=11 // pred_region
        _
      $region40: #{tpu_custom_call.1} parent=11 // pred_fallthru
        _
      // Predicated region
      $region41: #{tpu_custom_call.1} parent=11 // pred_check
        %p326 = pneg %p238
      $region42: #{tpu_custom_call.1} parent=11 // pred_check_branch
        %328 = sbr.rel (%p326) target = $region44
      $region43: #{tpu_custom_call.1} parent=11 // pred_region
        _
      $region44: #{tpu_custom_call.1} parent=11 // pred_fallthru
        _
    $region12: #{tpu_custom_call.1} parent=5 // pred_fallthru
      _
    %p329 = scmp.lt.s32.totalorder %s18, 2
    // Predicated region
    $region45: #{tpu_custom_call.1} parent=5 // pred_check
      %p330 = pneg %p329
    $region46: #{tpu_custom_call.1} parent=5 // pred_check_branch
      %332 = sbr.rel (%p330) target = $region48
    $region47: #{tpu_custom_call.1} parent=5 // pred_region
      // Predicated region
      $region49: #{tpu_custom_call.1} parent=47 // pred_check
        %p333 = pneg %p38
      $region50: #{tpu_custom_call.1} parent=47 // pred_check_branch
        %335 = sbr.rel (%p333) target = $region52
      $region51: #{tpu_custom_call.1} parent=47 // pred_region
        %s336 = smul.u32 4, %s18
        %p337 = scmp.lt.s32.totalorder %s336, 7
        %s338 = scalar_select %p337, %s336, 7
        %s339 = smul.addr %s338, 8
        %s340 = scalar_lea.vmem %s0, %s339
        %s341 = smul.u32 4, %s18
      $region52: #{tpu_custom_call.1} parent=47 // pred_fallthru
        _
      // Predicated region
      $region53: #{tpu_custom_call.1} parent=47 // pred_check
        %p342 = pneg %p64
      $region54: #{tpu_custom_call.1} parent=47 // pred_check_branch
        %344 = sbr.rel (%p342) target = $region56
      $region55: #{tpu_custom_call.1} parent=47 // pred_region
        %s345 = smul.u32 4, %s18
        %p346 = scmp.lt.s32.totalorder %s345, 7
        %s347 = scalar_select %p346, %s345, 7
        %s348 = smul.addr %s347, 8
        %s349 = scalar_lea.vmem %s1, %s348
        %s350 = smul.u32 4, %s18
      $region56: #{tpu_custom_call.1} parent=47 // pred_fallthru
        _
    $region48: #{tpu_custom_call.1} parent=5 // pred_fallthru
      _
    %p351 = scmp.le.s32.totalorder 1, %s18
    %p352 = scmp.lt.s32.totalorder %s18, 3
    %p353 = pnand %p351, %p352
    %p354 = pneg %p353
    // Predicated region
    $region57: #{tpu_custom_call.1} parent=5 // pred_check
      _
    $region58: #{tpu_custom_call.1} parent=5 // pred_check_branch
      %356 = sbr.rel (%p353) target = $region60
    $region59: #{tpu_custom_call.1} parent=5 // pred_region
      %s357 = ssub.s32 %s18, 1
      %s358 = smul.u32 4, %s23
      %p359 = scmp.lt.s32.totalorder %s358, 7
      %s360 = scalar_select %p359, %s358, 7
      %s361 = smul.addr %s360, 8
      %s362 = scalar_lea.vmem %s0, %s361
      %p363 = pneg %p44
      %p364 = pneg %p41
      %s365 = smul.u32 4, %s23
      %p366 = scmp.lt.s32.totalorder %s365, 7
      %s367 = scalar_select %p366, %s365, 7
      %s368 = smul.addr %s367, 8
      %s369 = scalar_lea.vmem %s1, %s368
      %p370 = pneg %p70
      %p371 = pneg %p67
      %p372 = pneg %p91
      %p373 = pneg %p88
      %p374 = pneg %p112
      %p375 = pneg %p109
      %p376 = pneg %p133
      %p377 = pneg %p130
      %p378 = pneg %p154
      %p379 = pneg %p151
      %p380 = pneg %p175
      %p381 = pneg %p172
      %p382 = pneg %p196
      %p383 = pneg %p193
      %p384 = pneg %p217
      %p385 = pneg %p214
      %p386 = pneg %p238
      %p387 = pneg %p235
      %p388 = pneg %p264
      %p389 = pneg %p261
      %s390 = smul.u32 4, %s23
      %p391 = scmp.lt.s32.totalorder %s390, 7
      %s392 = scalar_select %p391, %s390, 7
      %s393 = smul.addr %s392, 8
      %s394 = scalar_lea.vmem %s10, %s393
      %p395 = pneg %p290
      %p396 = pneg %p287
      %s397 = smul.u32 4, %s23
      %p398 = scmp.lt.s32.totalorder %s397, 7
      %s399 = scalar_select %p398, %s397, 7
      %s400 = smul.addr %s399, 8
      %s401 = scalar_lea.vmem %s11, %s400
      %s402 = smul.u32 4, %s23
      %p403 = scmp.lt.s32.totalorder %s402, 7
      %s404 = scalar_select %p403, %s402, 7
      %s405 = smul.addr %s404, 8
      %s406 = scalar_lea.vmem %s0, %s405
      %s407 = smul.u32 4, %s23
      %s408 = smul.u32 4, %s23
      %p409 = scmp.lt.s32.totalorder %s408, 7
      %s410 = scalar_select %p409, %s408, 7
      %s411 = smul.addr %s410, 8
      %s412 = scalar_lea.vmem %s1, %s411
      %s413 = smul.u32 4, %s23
      %s414 = smul.u32 4, %s23
      %p415 = scmp.lt.s32.totalorder %s414, 7
      %s416 = scalar_select %p415, %s414, 7
      %s417 = smul.addr %s416, 8
      %s418 = scalar_lea.vmem %s10, %s417
      %s419 = smul.u32 4, %s23
      %s420 = smul.u32 4, %s23
      %p421 = scmp.lt.s32.totalorder %s420, 7
      %s422 = scalar_select %p421, %s420, 7
      %s423 = smul.addr %s422, 8
      %s424 = scalar_lea.vmem %s11, %s423
      %s425 = smul.u32 4, %s23
      %v426 = vld [vmem:[%s406] sm:$0xff]
      %v427 = vld [vmem:[%s406 + $0x8] sm:$0xff]
      %v428 = vld [vmem:[%s406 + $0x10] sm:$0xff]
      %v429 = vld [vmem:[%s406 + $0x18] sm:$0xff]
      %v430 = vld [vmem:[%s2] sm:$0xff]
      %v431 = vld [vmem:[%s2 + $0x8] sm:$0xff]
      %v432 = vld [vmem:[%s2 + $0x10] sm:$0xff]
      %v433 = vld [vmem:[%s2 + $0x18] sm:$0xff]
      %v434 = vld [vmem:[%s3] sm:$0x1]
      %v436 = vlaneseq
      %v437 = vshrl.u32 %v436, 7
      %v438 = vsub.s32 0, %v437
      %v439 = vrot.slane %v434, %v438
      %vm441 = vcmask 261120
      %v443 = vsel %vm441, %v426, 0
      %v446 = vsel %vm441, %v427, 0
      %v449 = vsel %vm441, %v428, 0
      %v452 = vsel %vm441, %v429, 0
      %454 = vmatprep.subr.mxu0 0.0
      %455 = vmatpush1.msra.mxu0 %v430
      %456 = vmatprep.subr.mxu0 0.0
      %457 = vmatpush1.msra.mxu0 %v431
      %458 = vmatprep.subr.mxu0 0.0
      %459 = vmatpush1.msra.mxu0 %v432
      %460 = vmatprep.subr.mxu0 0.0
      %461 = vmatpush1.msra.mxu0 %v433
      %462 = vmatprep.subr.mxu0 0.0
      %463 = vmatpush1.msra.mxu0 0.0
      %464 = vmatprep.subr.mxu0 0.0
      %465 = vmatpush1.msra.mxu0 0.0
      %466 = vmatprep.subr.mxu0 0.0
      %467 = vmatpush1.msra.mxu0 0.0
      %468 = vmatprep.subr.mxu0 0.0
      %469 = vmatpush1.msra.mxu0 0.0
      %470 = vmatprep.subr.mxu0 0.0
      %471 = vmatpush1.msra.mxu0 0.0
      %472 = vmatprep.subr.mxu0 0.0
      %473 = vmatpush1.msra.mxu0 0.0
      %474 = vmatprep.subr.mxu0 0.0
      %475 = vmatpush1.msra.mxu0 0.0
      %476 = vmatprep.subr.mxu0 0.0
      %477 = vmatpush1.msra.mxu0 0.0
      %478 = vmatprep.subr.mxu0 0.0
      %479 = vmatpush1.msra.mxu0 0.0
      %480 = vmatprep.subr.mxu0 0.0
      %481 = vmatpush1.msra.mxu0 0.0
      %482 = vmatprep.subr.mxu0 0.0
      %483 = vmatpush1.msra.mxu0 0.0
      %484 = vmatprep.subr.mxu0 0.0
      %485 = vmatpush1.msra.mxu0 0.0
      %486 = vmatprep.subr.mxu0 0.0
      %487 = vmatpush1.msra.mxu0 0.0
      %488 = vmatprep.subr.mxu0 0.0
      %489 = vmatpush1.msra.mxu0 0.0
      %490 = vmatprep.subr.mxu0 0.0
      %491 = vmatpush1.msra.mxu0 0.0
      %492 = vmatprep.subr.mxu0 0.0
      %493 = vmatpush1.msra.mxu0 0.0
      %494 = vmatprep.subr.mxu0 0.0
      %495 = vmatpush1.msra.mxu0 0.0
      %496 = vmatprep.subr.mxu0 0.0
      %497 = vmatpush1.msra.mxu0 0.0
      %498 = vmatprep.subr.mxu0 0.0
      %499 = vmatpush1.msra.mxu0 0.0
      %500 = vmatprep.subr.mxu0 0.0
      %501 = vmatpush1.msra.mxu0 0.0
      %502 = vmatprep.subr.mxu0 0.0
      %503 = vmatpush1.msra.mxu0 0.0
      %504 = vmatprep.subr.mxu0 0.0
      %505 = vmatpush1.msra.mxu0 0.0
      %506 = vmatprep.subr.mxu0 0.0
      %507 = vmatpush1.msra.mxu0 0.0
      %508 = vmatprep.subr.mxu0 0.0
      %509 = vmatpush1.msra.mxu0 0.0
      %510 = vmatprep.subr.mxu0 0.0
      %511 = vmatpush1.msra.mxu0 0.0
      %512 = vmatprep.subr.mxu0 0.0
      %513 = vmatpush1.msra.mxu0 0.0
      %514 = vmatprep.subr.mxu0 0.0
      %515 = vmatpush1.msra.mxu0 0.0
      %516 = vmatprep.subr.mxu0 0.0
      %517 = vmatpush1.msra.mxu0 0.0
      %518 = vmatprep.mubr.f32.mxu0 0.0
      %519 = vmatmul.mubr.f32.gmra.mrb[0].mxu0 %v443
      %v520 = vpop.f32.mrb[0].mxu0
      %v521 = vadd.f32 %v439, %v520
      %v522 = vpop.f32.mrb[0].mxu0
      %523 = vmatprep.mubr.f32.mxu0 0.0
      %524 = vmatmul.mubr.f32.gmra.mrb[0].mxu0 %v446
      %v525 = vpop.f32.mrb[0].mxu0
      %v526 = vadd.f32 %v439, %v525
      %v527 = vpop.f32.mrb[0].mxu0
      %528 = vmatprep.mubr.f32.mxu0 0.0
      %529 = vmatmul.mubr.f32.gmra.mrb[0].mxu0 %v449
      %v530 = vpop.f32.mrb[0].mxu0
      %v531 = vadd.f32 %v439, %v530
      %v532 = vpop.f32.mrb[0].mxu0
      %533 = vmatprep.mubr.f32.mxu0 0.0
      %534 = vmatmul.mubr.f32.gmra.mrb[0].mxu0 %v452
      %v535 = vpop.f32.mrb[0].mxu0
      %v536 = vadd.f32 %v439, %v535
      %v537 = vpop.f32.mrb[0].mxu0
      %538 = vdwg.mxu0
      %v539 = vmax.f32 %v521, 0.0
      %v540 = vmax.f32 %v526, 0.0
      %v541 = vmax.f32 %v531, 0.0
      %v542 = vmax.f32 %v536, 0.0
      %v543 = vld [vmem:[%s4] sm:$0xff]
      %v544 = vld [vmem:[%s4 + $0x8] sm:$0xff]
      %v545 = vld [vmem:[%s4 + $0x10] sm:$0xff]
      %v546 = vld [vmem:[%s4 + $0x18] sm:$0xff]
      %v547 = vld [vmem:[%s4 + $0x20] sm:$0xff]
      %v548 = vld [vmem:[%s4 + $0x28] sm:$0xff]
      %v549 = vld [vmem:[%s4 + $0x30] sm:$0xff]
      %v550 = vld [vmem:[%s4 + $0x38] sm:$0xff]
      %v551 = vld [vmem:[%s5] sm:$0x1]
      %v553 = vlaneseq
      %v554 = vshrl.u32 %v553, 7
      %v555 = vsub.s32 0, %v554
      %v556 = vrot.slane %v551, %v555
      %vm558 = vcmask 523264
      %v560 = vsel %vm558, %v539, 0
      %v563 = vsel %vm558, %v540, 0
      %v566 = vsel %vm558, %v541, 0
      %v569 = vsel %vm558, %v542, 0
      %571 = vmatprep.subr.mxu0 0.0
      %572 = vmatpush1.msra.mxu0 %v543
      %573 = vmatprep.subr.mxu0 0.0
      %574 = vmatpush1.msra.mxu0 %v544
      %575 = vmatprep.subr.mxu0 0.0
      %576 = vmatpush1.msra.mxu0 %v545
      %577 = vmatprep.subr.mxu0 0.0
      %578 = vmatpush1.msra.mxu0 %v546
      %579 = vmatprep.subr.mxu0 0.0
      %580 = vmatpush1.msra.mxu0 %v547
      %581 = vmatprep.subr.mxu0 0.0
      %582 = vmatpush1.msra.mxu0 %v548
      %583 = vmatprep.subr.mxu0 0.0
      %584 = vmatpush1.msra.mxu0 %v549
      %585 = vmatprep.subr.mxu0 0.0
      %586 = vmatpush1.msra.mxu0 %v550
      %587 = vmatprep.subr.mxu0 0.0
      %588 = vmatpush1.msra.mxu0 0.0
      %589 = vmatprep.subr.mxu0 0.0
      %590 = vmatpush1.msra.mxu0 0.0
      %591 = vmatprep.subr.mxu0 0.0
      %592 = vmatpush1.msra.mxu0 0.0
      %593 = vmatprep.subr.mxu0 0.0
      %594 = vmatpush1.msra.mxu0 0.0
      %595 = vmatprep.subr.mxu0 0.0
      %596 = vmatpush1.msra.mxu0 0.0
      %597 = vmatprep.subr.mxu0 0.0
      %598 = vmatpush1.msra.mxu0 0.0
      %599 = vmatprep.subr.mxu0 0.0
      %600 = vmatpush1.msra.mxu0 0.0
      %601 = vmatprep.subr.mxu0 0.0
      %602 = vmatpush1.msra.mxu0 0.0
      %603 = vmatprep.subr.mxu0 0.0
      %604 = vmatpush1.msra.mxu0 0.0
      %605 = vmatprep.subr.mxu0 0.0
      %606 = vmatpush1.msra.mxu0 0.0
      %607 = vmatprep.subr.mxu0 0.0
      %608 = vmatpush1.msra.mxu0 0.0
      %609 = vmatprep.subr.mxu0 0.0
      %610 = vmatpush1.msra.mxu0 0.0
      %611 = vmatprep.subr.mxu0 0.0
      %612 = vmatpush1.msra.mxu0 0.0
      %613 = vmatprep.subr.mxu0 0.0
      %614 = vmatpush1.msra.mxu0 0.0
      %615 = vmatprep.subr.mxu0 0.0
      %616 = vmatpush1.msra.mxu0 0.0
      %617 = vmatprep.subr.mxu0 0.0
      %618 = vmatpush1.msra.mxu0 0.0
      %619 = vmatprep.subr.mxu0 0.0
      %620 = vmatpush1.msra.mxu0 0.0
      %621 = vmatprep.subr.mxu0 0.0
      %622 = vmatpush1.msra.mxu0 0.0
      %623 = vmatprep.subr.mxu0 0.0
      %624 = vmatpush1.msra.mxu0 0.0
      %625 = vmatprep.subr.mxu0 0.0
      %626 = vmatpush1.msra.mxu0 0.0
      %627 = vmatprep.subr.mxu0 0.0
      %628 = vmatpush1.msra.mxu0 0.0
      %629 = vmatprep.subr.mxu0 0.0
      %630 = vmatpush1.msra.mxu0 0.0
      %631 = vmatprep.subr.mxu0 0.0
      %632 = vmatpush1.msra.mxu0 0.0
      %633 = vmatprep.subr.mxu0 0.0
      %634 = vmatpush1.msra.mxu0 0.0
      %635 = vmatprep.mubr.f32.mxu0 0.0
      %636 = vmatmul.mubr.f32.gmra.mrb[0].mxu0 %v560
      %v637 = vpop.f32.mrb[0].mxu0
      %v638 = vadd.f32 %v556, %v637
      %v639 = vpop.f32.mrb[0].mxu0
      %640 = vmatprep.mubr.f32.mxu0 0.0
      %641 = vmatmul.mubr.f32.gmra.mrb[0].mxu0 %v563
      %v642 = vpop.f32.mrb[0].mxu0
      %v643 = vadd.f32 %v556, %v642
      %v644 = vpop.f32.mrb[0].mxu0
      %645 = vmatprep.mubr.f32.mxu0 0.0
      %646 = vmatmul.mubr.f32.gmra.mrb[0].mxu0 %v566
      %v647 = vpop.f32.mrb[0].mxu0
      %v648 = vadd.f32 %v556, %v647
      %v649 = vpop.f32.mrb[0].mxu0
      %650 = vmatprep.mubr.f32.mxu0 0.0
      %651 = vmatmul.mubr.f32.gmra.mrb[0].mxu0 %v569
      %v652 = vpop.f32.mrb[0].mxu0
      %v653 = vadd.f32 %v556, %v652
      %v654 = vpop.f32.mrb[0].mxu0
      %655 = vdwg.mxu0
      %v656 = vmul.f32 %v638, 0.5
      %v657 = vmul.f32 %v643, 0.5
      %v658 = vmul.f32 %v648, 0.5
      %v659 = vmul.f32 %v653, 0.5
      %v660 = vmul.f32 %v656, 1.442695
      %v661 = vpow.pop %v660
      %v662 = vmul.f32 %v657, 1.442695
      %v663 = vpow.pop %v662
      %v664 = vmul.f32 %v658, 1.442695
      %v665 = vpow.pop %v664
      %v666 = vmul.f32 %v659, 1.442695
      %v667 = vpow.pop %v666
      %v668 = vld [vmem:[%s412] sm:$0xff]
      %v669 = vld [vmem:[%s412 + $0x8] sm:$0xff]
      %v670 = vld [vmem:[%s412 + $0x10] sm:$0xff]
      %v671 = vld [vmem:[%s412 + $0x18] sm:$0xff]
      %676 = vrot.lane.b32.xlu0 %v661, 112
      %v677 = vpop.permute.xlu0 %676
      %678 = vrot.lane.b32.xlu0 %v663, 112
      %v679 = vpop.permute.xlu0 %678
      %680 = vrot.lane.b32.xlu0 %v665, 112
      %v681 = vpop.permute.xlu0 %680
      %682 = vrot.lane.b32.xlu0 %v667, 112
      %v683 = vpop.permute.xlu0 %682
      %v688 = vmul.f32 %v668, %v677
      %v689 = vmul.f32 %v669, %v679
      %v690 = vmul.f32 %v670, %v681
      %v691 = vmul.f32 %v671, %v683
      %v692 = vadd.f32 %v638, %v688
      %v693 = vadd.f32 %v643, %v689
      %v694 = vadd.f32 %v648, %v690
      %v695 = vadd.f32 %v653, %v691
      %v696 = vld [vmem:[%s6] sm:$0xff]
      %v697 = vld [vmem:[%s6 + $0x8] sm:$0xff]
      %v698 = vld [vmem:[%s7] sm:$0x1]
      %v700 = vlaneseq
      %v701 = vshrl.u32 %v700, 7
      %v702 = vsub.s32 0, %v701
      %v703 = vrot.slane %v698, %v702
      %vm705 = vcmask 130048
      %v707 = vsel %vm705, %v692, 0
      %v710 = vsel %vm705, %v693, 0
      %v713 = vsel %vm705, %v694, 0
      %v716 = vsel %vm705, %v695, 0
      %718 = vmatprep.subr.mxu0 0.0
      %719 = vmatpush1.msra.mxu0 %v696
      %720 = vmatprep.subr.mxu0 0.0
      %721 = vmatpush1.msra.mxu0 %v697
      %722 = vmatprep.subr.mxu0 0.0
      %723 = vmatpush1.msra.mxu0 0.0
      %724 = vmatprep.subr.mxu0 0.0
      %725 = vmatpush1.msra.mxu0 0.0
      %726 = vmatprep.subr.mxu0 0.0
      %727 = vmatpush1.msra.mxu0 0.0
      %728 = vmatprep.subr.mxu0 0.0
      %729 = vmatpush1.msra.mxu0 0.0
      %730 = vmatprep.subr.mxu0 0.0
      %731 = vmatpush1.msra.mxu0 0.0
      %732 = vmatprep.subr.mxu0 0.0
      %733 = vmatpush1.msra.mxu0 0.0
      %734 = vmatprep.subr.mxu0 0.0
      %735 = vmatpush1.msra.mxu0 0.0
      %736 = vmatprep.subr.mxu0 0.0
      %737 = vmatpush1.msra.mxu0 0.0
      %738 = vmatprep.subr.mxu0 0.0
      %739 = vmatpush1.msra.mxu0 0.0
      %740 = vmatprep.subr.mxu0 0.0
      %741 = vmatpush1.msra.mxu0 0.0
      %742 = vmatprep.subr.mxu0 0.0
      %743 = vmatpush1.msra.mxu0 0.0
      %744 = vmatprep.subr.mxu0 0.0
      %745 = vmatpush1.msra.mxu0 0.0
      %746 = vmatprep.subr.mxu0 0.0
      %747 = vmatpush1.msra.mxu0 0.0
      %748 = vmatprep.subr.mxu0 0.0
      %749 = vmatpush1.msra.mxu0 0.0
      %750 = vmatprep.subr.mxu0 0.0
      %751 = vmatpush1.msra.mxu0 0.0
      %752 = vmatprep.subr.mxu0 0.0
      %753 = vmatpush1.msra.mxu0 0.0
      %754 = vmatprep.subr.mxu0 0.0
      %755 = vmatpush1.msra.mxu0 0.0
      %756 = vmatprep.subr.mxu0 0.0
      %757 = vmatpush1.msra.mxu0 0.0
      %758 = vmatprep.subr.mxu0 0.0
      %759 = vmatpush1.msra.mxu0 0.0
      %760 = vmatprep.subr.mxu0 0.0
      %761 = vmatpush1.msra.mxu0 0.0
      %762 = vmatprep.subr.mxu0 0.0
      %763 = vmatpush1.msra.mxu0 0.0
      %764 = vmatprep.subr.mxu0 0.0
      %765 = vmatpush1.msra.mxu0 0.0
      %766 = vmatprep.subr.mxu0 0.0
      %767 = vmatpush1.msra.mxu0 0.0
      %768 = vmatprep.subr.mxu0 0.0
      %769 = vmatpush1.msra.mxu0 0.0
      %770 = vmatprep.subr.mxu0 0.0
      %771 = vmatpush1.msra.mxu0 0.0
      %772 = vmatprep.subr.mxu0 0.0
      %773 = vmatpush1.msra.mxu0 0.0
      %774 = vmatprep.subr.mxu0 0.0
      %775 = vmatpush1.msra.mxu0 0.0
      %776 = vmatprep.subr.mxu0 0.0
      %777 = vmatpush1.msra.mxu0 0.0
      %778 = vmatprep.subr.mxu0 0.0
      %779 = vmatpush1.msra.mxu0 0.0
      %780 = vmatprep.subr.mxu0 0.0
      %781 = vmatpush1.msra.mxu0 0.0
      %782 = vmatprep.mubr.f32.mxu0 0.0
      %783 = vmatmul.mubr.f32.gmra.mrb[0].mxu0 %v707
      %v784 = vpop.f32.mrb[0].mxu0
      %v785 = vadd.f32 %v703, %v784
      %v786 = vpop.f32.mrb[0].mxu0
      %787 = vmatprep.mubr.f32.mxu0 0.0
      %788 = vmatmul.mubr.f32.gmra.mrb[0].mxu0 %v710
      %v789 = vpop.f32.mrb[0].mxu0
      %v790 = vadd.f32 %v703, %v789
      %v791 = vpop.f32.mrb[0].mxu0
      %792 = vmatprep.mubr.f32.mxu0 0.0
      %793 = vmatmul.mubr.f32.gmra.mrb[0].mxu0 %v713
      %v794 = vpop.f32.mrb[0].mxu0
      %v795 = vadd.f32 %v703, %v794
      %v796 = vpop.f32.mrb[0].mxu0
      %797 = vmatprep.mubr.f32.mxu0 0.0
      %798 = vmatmul.mubr.f32.gmra.mrb[0].mxu0 %v716
      %v799 = vpop.f32.mrb[0].mxu0
      %v800 = vadd.f32 %v703, %v799
      %v801 = vpop.f32.mrb[0].mxu0
      %802 = vdwg.mxu0
      %v803 = vmax.f32 %v785, 0.0
      %v804 = vmax.f32 %v790, 0.0
      %v805 = vmax.f32 %v795, 0.0
      %v806 = vmax.f32 %v800, 0.0
      %v807 = vld [vmem:[%s8] sm:$0xff]
      %v808 = vld [vmem:[%s8 + $0x8] sm:$0xff]
      %v809 = vld [vmem:[%s8 + $0x10] sm:$0xff]
      %v810 = vld [vmem:[%s8 + $0x18] sm:$0xff]
      %v811 = vld [vmem:[%s8 + $0x20] sm:$0xff]
      %v812 = vld [vmem:[%s8 + $0x28] sm:$0xff]
      %v813 = vld [vmem:[%s8 + $0x30] sm:$0xff]
      %v814 = vld [vmem:[%s8 + $0x38] sm:$0xff]
      %v815 = vld [vmem:[%s9] sm:$0x1]
      %v817 = vlaneseq
      %v818 = vshrl.u32 %v817, 7
      %v819 = vsub.s32 0, %v818
      %v820 = vrot.slane %v815, %v819
      %v823 = vsel %vm558, %v803, 0
      %v826 = vsel %vm558, %v804, 0
      %v829 = vsel %vm558, %v805, 0
      %v832 = vsel %vm558, %v806, 0
      %834 = vmatprep.subr.mxu0 0.0
      %835 = vmatpush1.msra.mxu0 %v807
      %836 = vmatprep.subr.mxu0 0.0
      %837 = vmatpush1.msra.mxu0 %v808
      %838 = vmatprep.subr.mxu0 0.0
      %839 = vmatpush1.msra.mxu0 %v809
      %840 = vmatprep.subr.mxu0 0.0
      %841 = vmatpush1.msra.mxu0 %v810
      %842 = vmatprep.subr.mxu0 0.0
      %843 = vmatpush1.msra.mxu0 %v811
      %844 = vmatprep.subr.mxu0 0.0
      %845 = vmatpush1.msra.mxu0 %v812
      %846 = vmatprep.subr.mxu0 0.0
      %847 = vmatpush1.msra.mxu0 %v813
      %848 = vmatprep.subr.mxu0 0.0
      %849 = vmatpush1.msra.mxu0 %v814
      %850 = vmatprep.subr.mxu0 0.0
      %851 = vmatpush1.msra.mxu0 0.0
      %852 = vmatprep.subr.mxu0 0.0
      %853 = vmatpush1.msra.mxu0 0.0
      %854 = vmatprep.subr.mxu0 0.0
      %855 = vmatpush1.msra.mxu0 0.0
      %856 = vmatprep.subr.mxu0 0.0
      %857 = vmatpush1.msra.mxu0 0.0
      %858 = vmatprep.subr.mxu0 0.0
      %859 = vmatpush1.msra.mxu0 0.0
      %860 = vmatprep.subr.mxu0 0.0
      %861 = vmatpush1.msra.mxu0 0.0
      %862 = vmatprep.subr.mxu0 0.0
      %863 = vmatpush1.msra.mxu0 0.0
      %864 = vmatprep.subr.mxu0 0.0
      %865 = vmatpush1.msra.mxu0 0.0
      %866 = vmatprep.subr.mxu0 0.0
      %867 = vmatpush1.msra.mxu0 0.0
      %868 = vmatprep.subr.mxu0 0.0
      %869 = vmatpush1.msra.mxu0 0.0
      %870 = vmatprep.subr.mxu0 0.0
      %871 = vmatpush1.msra.mxu0 0.0
      %872 = vmatprep.subr.mxu0 0.0
      %873 = vmatpush1.msra.mxu0 0.0
      %874 = vmatprep.subr.mxu0 0.0
      %875 = vmatpush1.msra.mxu0 0.0
      %876 = vmatprep.subr.mxu0 0.0
      %877 = vmatpush1.msra.mxu0 0.0
      %878 = vmatprep.subr.mxu0 0.0
      %879 = vmatpush1.msra.mxu0 0.0
      %880 = vmatprep.subr.mxu0 0.0
      %881 = vmatpush1.msra.mxu0 0.0
      %882 = vmatprep.subr.mxu0 0.0
      %883 = vmatpush1.msra.mxu0 0.0
      %884 = vmatprep.subr.mxu0 0.0
      %885 = vmatpush1.msra.mxu0 0.0
      %886 = vmatprep.subr.mxu0 0.0
      %887 = vmatpush1.msra.mxu0 0.0
      %888 = vmatprep.subr.mxu0 0.0
      %889 = vmatpush1.msra.mxu0 0.0
      %890 = vmatprep.subr.mxu0 0.0
      %891 = vmatpush1.msra.mxu0 0.0
      %892 = vmatprep.subr.mxu0 0.0
      %893 = vmatpush1.msra.mxu0 0.0
      %894 = vmatprep.subr.mxu0 0.0
      %895 = vmatpush1.msra.mxu0 0.0
      %896 = vmatprep.subr.mxu0 0.0
      %897 = vmatpush1.msra.mxu0 0.0
      %898 = vmatprep.mubr.f32.mxu0 0.0
      %899 = vmatmul.mubr.f32.gmra.mrb[0].mxu0 %v823
      %v900 = vpop.f32.mrb[0].mxu0
      %v901 = vadd.f32 %v820, %v900
      %v902 = vpop.f32.mrb[0].mxu0
      %903 = vmatprep.mubr.f32.mxu0 0.0
      %904 = vmatmul.mubr.f32.gmra.mrb[0].mxu0 %v826
      %v905 = vpop.f32.mrb[0].mxu0
      %v906 = vadd.f32 %v820, %v905
      %v907 = vpop.f32.mrb[0].mxu0
      %908 = vmatprep.mubr.f32.mxu0 0.0
      %909 = vmatmul.mubr.f32.gmra.mrb[0].mxu0 %v829
      %v910 = vpop.f32.mrb[0].mxu0
      %v911 = vadd.f32 %v820, %v910
      %v912 = vpop.f32.mrb[0].mxu0
      %913 = vmatprep.mubr.f32.mxu0 0.0
      %914 = vmatmul.mubr.f32.gmra.mrb[0].mxu0 %v832
      %v915 = vpop.f32.mrb[0].mxu0
      %v916 = vadd.f32 %v820, %v915
      %v917 = vpop.f32.mrb[0].mxu0
      %918 = vdwg.mxu0
      %v919 = vsub.f32 0.0, %v901
      %v920 = vsub.f32 0.0, %v906
      %v921 = vsub.f32 0.0, %v911
      %v922 = vsub.f32 0.0, %v916
      %v923 = vmul.f32 %v919, 1.442695
      %v924 = vpow.pop %v923
      %v925 = vmul.f32 %v920, 1.442695
      %v926 = vpow.pop %v925
      %v927 = vmul.f32 %v921, 1.442695
      %v928 = vpow.pop %v927
      %v929 = vmul.f32 %v922, 1.442695
      %v930 = vpow.pop %v929
      %v931 = vadd.f32 %v924, 1.0
      %v932 = vadd.f32 %v926, 1.0
      %v933 = vadd.f32 %v928, 1.0
      %v934 = vadd.f32 %v930, 1.0
      %v935 = vrcp.pop %v931
      %v936 = vrcp.pop %v932
      %v937 = vrcp.pop %v933
      %v938 = vrcp.pop %v934
      %939 = vst.msk [vmem:[%s418] sm:$0xff] %vm441, %v935
      %940 = vst.msk [vmem:[%s418 + $0x8] sm:$0xff] %vm441, %v936
      %941 = vst.msk [vmem:[%s418 + $0x10] sm:$0xff] %vm441, %v937
      %942 = vst.msk [vmem:[%s418 + $0x18] sm:$0xff] %vm441, %v938
      %943 = vst.msk [vmem:[%s424] sm:$0xff] %vm441, %v638
      %944 = vst.msk [vmem:[%s424 + $0x8] sm:$0xff] %vm441, %v643
      %945 = vst.msk [vmem:[%s424 + $0x10] sm:$0xff] %vm441, %v648
      %946 = vst.msk [vmem:[%s424 + $0x18] sm:$0xff] %vm441, %v653
      %s947 = smul.u32 4, %s23
      %p948 = scmp.lt.s32.totalorder %s947, 7
      %s949 = scalar_select %p948, %s947, 7
      %s950 = smul.addr %s949, 8
      %s951 = scalar_lea.vmem %s10, %s950
      %s952 = smul.u32 4, %s23
      %p953 = scmp.lt.s32.totalorder %s952, 7
      %s954 = scalar_select %p953, %s952, 7
      %s955 = smul.addr %s954, 8
      %s956 = scalar_lea.vmem %s11, %s955
      // Predicated region
      $region61: #{tpu_custom_call.1} parent=59 // pred_check
        %p957 = pneg %p261
      $region62: #{tpu_custom_call.1} parent=59 // pred_check_branch
        %959 = sbr.rel (%p957) target = $region64
      $region63: #{tpu_custom_call.1} parent=59 // pred_region
        %s960 = smul.u32 4, %s23
      $region64: #{tpu_custom_call.1} parent=59 // pred_fallthru
        _
      // Predicated region
      $region65: #{tpu_custom_call.1} parent=59 // pred_check
        %p961 = pneg %p287
      $region66: #{tpu_custom_call.1} parent=59 // pred_check_branch
        %963 = sbr.rel (%p961) target = $region68
      $region67: #{tpu_custom_call.1} parent=59 // pred_region
        %s964 = smul.u32 4, %s23
      $region68: #{tpu_custom_call.1} parent=59 // pred_fallthru
        _
    $region60: #{tpu_custom_call.1} parent=5 // pred_fallthru
      _
    %p965 = scmp.le.s32.totalorder 2, %s18
    // Predicated region
    $region69: #{tpu_custom_call.1} parent=5 // pred_check
      %p966 = pneg %p965
    $region70: #{tpu_custom_call.1} parent=5 // pred_check_branch
      %968 = sbr.rel (%p966) target = $region72
    $region71: #{tpu_custom_call.1} parent=5 // pred_region
      %s969 = ssub.s32 %s18, 2
      // Predicated region
      $region73: #{tpu_custom_call.1} parent=71 // pred_check
        %p970 = pneg %p267
      $region74: #{tpu_custom_call.1} parent=71 // pred_check_branch
        %972 = sbr.rel (%p970) target = $region76
      $region75: #{tpu_custom_call.1} parent=71 // pred_region
        %s973 = smul.u32 4, %s24
        %p974 = scmp.lt.s32.totalorder %s973, 7
        %s975 = scalar_select %p974, %s973, 7
        %s976 = smul.addr %s975, 8
        %s977 = scalar_lea.vmem %s10, %s976
      $region76: #{tpu_custom_call.1} parent=71 // pred_fallthru
        _
      // Predicated region
      $region77: #{tpu_custom_call.1} parent=71 // pred_check
        %p978 = pneg %p293
      $region78: #{tpu_custom_call.1} parent=71 // pred_check_branch
        %980 = sbr.rel (%p978) target = $region80
      $region79: #{tpu_custom_call.1} parent=71 // pred_region
        %s981 = smul.u32 4, %s24
        %p982 = scmp.lt.s32.totalorder %s981, 7
        %s983 = scalar_select %p982, %s981, 7
        %s984 = smul.addr %s983, 8
        %s985 = scalar_lea.vmem %s11, %s984
      $region80: #{tpu_custom_call.1} parent=71 // pred_fallthru
        _
    $region72: #{tpu_custom_call.1} parent=5 // pred_fallthru
      _
  $region6: #{tpu_custom_call.1} parent=0 // loop_footer
    %s22 = sadd.s32 1, %s18
  $region7: #{tpu_custom_call.1} parent=0 // loop_footer_branch
    %17 = sbr.rel target = $region3
  $region8: #{tpu_custom_call.1} parent=0 // loop_exit
    _

</llo_original>
